<compile_context>
chip_gen: v7x
topology: tpu7x:2x2x1
jax: 0.10.0
libtpu: 0.0.40
codegen_flags: <defaults>
</compile_context>

<pallas_src>
import functools

import jax
import jax.numpy as jnp
from jax.experimental import pallas as pl
from jax.experimental.pallas import tpu as pltpu

_DIMS = (((1,), (1,)), ((), ()))            # contract last dim of (1,T) with last dim of (TF,T)
_PREC = jax.lax.Precision.HIGHEST           # full-f32 MXU contraction


def _row_dot(lhs_1t, rhs_ft):
    # (1, T) . (TF, T)^T -> (1, TF): lane-dense reduction over frames on the MXU.
    return jax.lax.dot_general(lhs_1t, rhs_ft, _DIMS, precision=_PREC,
                               preferred_element_type=jnp.float32)


def _tstp_kernel_unweighted(x_ref, o_ref, sx_ref, sxx_ref, *, inv_t, inv_tm1):
    t = pl.program_id(2)

    @pl.when(t == 0)
    def _init():
        sx_ref[...] = jnp.zeros_like(sx_ref)
        sxx_ref[...] = jnp.zeros_like(sxx_ref)

    x = x_ref[0].astype(jnp.float32)                        # (TF, TT)
    ones = jnp.ones((1, x.shape[-1]), jnp.float32)
    sx_ref[...] += _row_dot(ones, x)                        # running sum(x)    (1, TF)
    sxx_ref[...] += _row_dot(ones, x * x)                   # running sum(x^2)  (1, TF)

    @pl.when(t == pl.num_programs(2) - 1)
    def _finalize():
        sx = sx_ref[...]
        mean = sx * inv_t                                   # (1, TF)
        var = (sxx_ref[...] - sx * mean) * inv_tm1          # unbiased (ddof=1)
        std = jnp.sqrt(jnp.maximum(var, 0.0))
        o_ref[0, 0, :] = mean[0].astype(o_ref.dtype)
        o_ref[0, 1, :] = std[0].astype(o_ref.dtype)


def _tstp_kernel_weighted(x_ref, w_ref, o_ref, sw_ref, sw2_ref, swx_ref, swx2_ref):
    t = pl.program_id(2)

    @pl.when(t == 0)
    def _init():
        sw_ref[...] = jnp.zeros_like(sw_ref)
        sw2_ref[...] = jnp.zeros_like(sw2_ref)
        swx_ref[...] = jnp.zeros_like(swx_ref)
        swx2_ref[...] = jnp.zeros_like(swx2_ref)

    x = x_ref[0].astype(jnp.float32)                        # (TF, TT)
    w = w_ref[...].astype(jnp.float32)                      # (1, TT)
    swx_ref[...] += _row_dot(w, x)                          # sum(w * x)    (1, TF)
    swx2_ref[...] += _row_dot(w, x * x)                     # sum(w * x^2)  (1, TF)
    sw_ref[...] += jnp.sum(w, axis=-1, keepdims=True)       # (1,1) broadcast across lanes
    sw2_ref[...] += jnp.sum(w * w, axis=-1, keepdims=True)

    @pl.when(t == pl.num_programs(2) - 1)
    def _finalize():
        sw, sw2 = sw_ref[...], sw2_ref[...]
        swx, swx2 = swx_ref[...], swx2_ref[...]
        v1 = sw + 1e-8
        mean = swx / v1
        num = swx2 - 2.0 * mean * swx + mean * mean * sw    # == sum(w * (x - mean)^2)
        denom = v1 - sw2 / v1 + 1e-8
        std = jnp.sqrt(jnp.maximum(num, 0.0) / denom)
        o_ref[0, 0, :] = mean[0].astype(o_ref.dtype)
        o_ref[0, 1, :] = std[0].astype(o_ref.dtype)


def _pick_tile(dim, candidates):
    for c in candidates:
        if c <= dim and dim % c == 0:
            return c
    return dim                                              # fall back to the full extent


def tstp(features, weights=None, *, tf=None, tt=None):
    """TSTP forward.

    features : (batch, dimension, channel, frames)
    weights  : optional (batch, frames)
    returns  : (batch, 2 * dimension * channel) == cat([mean, unbiased std], dim=-1)
    """
    B, D, C, T = features.shape
    F = D * C
    x = features.reshape(B, F, T)                           # 'b d c t -> b (d c) t' (free)

    tf = tf or _pick_tile(F, (512, 384, 256, 128))          # multiple of 128 (or == F)
    tt = tt or _pick_tile(T, (1024, 768, 512, 384, 256, 128))
    assert F % tf == 0 and T % tt == 0
    grid = (B, F // tf, T // tt)

    out_shape = jax.ShapeDtypeStruct((B, 2, F), x.dtype)
    x_spec = pl.BlockSpec((1, tf, tt), lambda b, f, t: (b, f, t))
    out_spec = pl.BlockSpec((1, 2, tf), lambda b, f, t: (b, 0, f))

    itemsize = int(x.dtype.itemsize)
    # double-buffered input tile + weights + resident output tile + accumulators + slack
    vmem_needed = 2 * tf * tt * itemsize + 2 * tt * 4 + 2 * 2 * tf * itemsize + 6 * tf * 4
    compiler_params = pltpu.CompilerParams(
        dimension_semantics=("parallel", "parallel", "arbitrary"),
        vmem_limit_bytes=int(min(max(2 * vmem_needed, 32 * 1024 * 1024), 128 * 1024 * 1024)),
    )
    cost = pl.CostEstimate(
        flops=int(6 * B * F * T),
        transcendentals=int(B * F),
        bytes_accessed=int(B * F * T * itemsize + B * 2 * F * itemsize
                           + (0 if weights is None else B * T * int(weights.dtype.itemsize))),
    )

    if weights is None:
        kernel = functools.partial(
            _tstp_kernel_unweighted,
            inv_t=1.0 / T,
            inv_tm1=(1.0 / (T - 1)) if T > 1 else float("nan"),  # T==1 -> nan, like torch std(ddof=1)
        )
        out = pl.pallas_call(
            kernel,
            out_shape=out_shape,
            grid=grid,
            in_specs=[x_spec],
            out_specs=out_spec,
            scratch_shapes=[pltpu.VMEM((1, tf), jnp.float32)] * 2,
            compiler_params=compiler_params,
            cost_estimate=cost,
        )(x)
    else:
        # TODO(synk): pyannote StatsPool nearest-interpolates weights when num_weights != frames;
        # here we require weights.shape == (batch, frames).
        assert weights.shape == (B, T)
        w_spec = pl.BlockSpec((1, tt), lambda b, f, t: (b, t))
        out = pl.pallas_call(
            _tstp_kernel_weighted,
            out_shape=out_shape,
            grid=grid,
            in_specs=[x_spec, w_spec],
            out_specs=out_spec,
            scratch_shapes=[pltpu.VMEM((1, tf), jnp.float32)] * 4,
            compiler_params=compiler_params,
            cost_estimate=cost,
        )(x, weights)

    # (B, 2, F) -> (B, 2F): row = [mean_0..mean_{F-1}, std_0..std_{F-1}]
    return out.reshape(B, 2 * F)


# ---------------- pure-JAX reference (for verification) ----------------
def _ref_tstp(features, weights=None):
    B, D, C, T = features.shape
    x = features.reshape(B, D * C, T).astype(jnp.float32)
    if weights is None:
        mean = x.mean(-1)
        std = jnp.std(x, axis=-1, ddof=1)
        return jnp.concatenate([mean, std], axis=-1)
    w = weights[:, None, :].astype(jnp.float32)
    v1 = w.sum(-1) + 1e-8
    mean = (x * w).sum(-1) / v1
    dx2 = jnp.square(x - mean[..., None])
    v2 = jnp.square(w).sum(-1)
    var = (dx2 * w).sum(-1) / (v1 - v2 / v1 + 1e-8)
    std = jnp.sqrt(var)
    return jnp.concatenate([mean, std], axis=-1)


if __name__ == "__main__":
    key = jax.random.PRNGKey(0)
    k1, k2, k3, k4 = jax.random.split(key, 4)

    # 1) Small shapes implied by the module: (batch, dimension, channel, frames).
    B, D, C, T = 2, 4, 4, 16
    features = jax.random.normal(k1, (B, D, C, T), dtype=jnp.float32)
    weights = jax.nn.sigmoid(jax.random.normal(k2, (B, T), dtype=jnp.float32))

    out_u = tstp(features)
    jax.block_until_ready(out_u)
    ref_u = _ref_tstp(features)
    assert out_u.shape == (B, 2 * D * C)
    assert jnp.allclose(out_u, ref_u, atol=1e-4, rtol=1e-4)

    out_w = tstp(features, weights)
    jax.block_until_ready(out_w)
    ref_w = _ref_tstp(features, weights)
    assert out_w.shape == (B, 2 * D * C)
    assert jnp.allclose(out_w, ref_w, atol=1e-4, rtol=1e-4)

    # 2) Lane-aligned case exercising F- and T-tiling (multi-step T accumulation).
    B2, D2, C2, T2 = 2, 8, 32, 256          # F = 256
    features2 = jax.random.normal(k3, (B2, D2, C2, T2), dtype=jnp.float32)
    weights2 = jax.nn.sigmoid(jax.random.normal(k4, (B2, T2), dtype=jnp.float32))

    out2_u = tstp(features2, tf=128, tt=128)
    jax.block_until_ready(out2_u)
    assert jnp.allclose(out2_u, _ref_tstp(features2), atol=1e-4, rtol=1e-4)

    out2_w = tstp(features2, weights2, tf=128, tt=128)
    jax.block_until_ready(out2_w)
    assert jnp.allclose(out2_w, _ref_tstp(features2, weights2), atol=1e-4, rtol=1e-4)

    print("KERNEL_OK")
</pallas_src>

<mosaic_0001>
module attributes {stable_mosaic.version = 11 : i64} {
  func.func @_tstp_kernel_unweighted(%arg0: i32, %arg1: i32, %arg2: i32, %arg3: memref<1x16x16xf32, #tpu.memory_space<vmem>>, %arg4: memref<1x2x16xf32, #tpu.memory_space<vmem>>, %arg5: memref<1x16xf32, #tpu.memory_space<vmem>>, %arg6: memref<1x16xf32, #tpu.memory_space<vmem>>) attributes {dimension_semantics = [#tpu.dimension_semantics<parallel>, #tpu.dimension_semantics<parallel>, #tpu.dimension_semantics<arbitrary>], iteration_bounds = array<i64: 2, 1, 1>, scalar_prefetch = 0 : i64, scratch_operands = 2 : i64, tpu.core_type = #tpu.core_type<tc>, window_params = [{transform_indices = @transform_0, window_bounds = array<i64: 1, 16, 16>}, {transform_indices = @transform_1, window_bounds = array<i64: 1, 2, 16>}]} {
    %c0_i32 = arith.constant 0 : i32
    %0 = arith.cmpi eq, %arg2, %c0_i32 : i32
    %1 = arith.extui %0 : i1 to i32
    %c0_i32_0 = arith.constant 0 : i32
    %2 = arith.cmpi ne, %1, %c0_i32_0 : i32
    scf.if %2 {
      %cst_15 = arith.constant 0.000000e+00 : f32
      %18 = vector.broadcast %cst_15 : f32 to vector<1x16xf32>
      %c0_16 = arith.constant 0 : index
      %c0_17 = arith.constant 0 : index
      %19 = vector.load %arg5[%c0_16, %c0_17] : memref<1x16xf32, #tpu.memory_space<vmem>>, vector<1x16xf32>
      tpu.vector_store %arg5[%c0_16, %c0_17], %18 {strides = array<i32>} : memref<1x16xf32, #tpu.memory_space<vmem>>, vector<1x16xf32>,
      %cst_18 = arith.constant 0.000000e+00 : f32
      %20 = vector.broadcast %cst_18 : f32 to vector<1x16xf32>
      %c0_19 = arith.constant 0 : index
      %c0_20 = arith.constant 0 : index
      %21 = vector.load %arg6[%c0_19, %c0_20] : memref<1x16xf32, #tpu.memory_space<vmem>>, vector<1x16xf32>
      tpu.vector_store %arg6[%c0_19, %c0_20], %20 {strides = array<i32>} : memref<1x16xf32, #tpu.memory_space<vmem>>, vector<1x16xf32>,
    } else {
    }
    %c0 = arith.constant 0 : index
    %c0_1 = arith.constant 0 : index
    %c0_2 = arith.constant 0 : index
    %3 = vector.load %arg3[%c0, %c0_1, %c0_2] : memref<1x16x16xf32, #tpu.memory_space<vmem>>, vector<1x16x16xf32>
    %4 = vector.shape_cast %3 : vector<1x16x16xf32> to vector<16x16xf32>
    %cst = arith.constant 1.000000e+00 : f32
    %5 = vector.broadcast %cst : f32 to vector<1x16xf32>
    %c0_3 = arith.constant 0 : index
    %c0_4 = arith.constant 0 : index
    %6 = vector.load %arg5[%c0_3, %c0_4] : memref<1x16xf32, #tpu.memory_space<vmem>>, vector<1x16xf32>
    %cst_5 = arith.constant dense<0.000000e+00> : vector<1x16xf32>
    %7 = tpu.matmul %5, %4, %cst_5 {dimension_numbers = #tpu.dot_dimension_numbers<[1], [1], [0], [0], [0, 0, 1, 0], [], []>, precision = #tpu.contract_precision<fp32>} : vector<1x16xf32>, vector<16x16xf32>, vector<1x16xf32> -> vector<1x16xf32>
    %8 = arith.addf %6, %7 : vector<1x16xf32>
    %c0_6 = arith.constant 0 : index
    %c0_7 = arith.constant 0 : index
    %9 = vector.load %arg5[%c0_6, %c0_7] : memref<1x16xf32, #tpu.memory_space<vmem>>, vector<1x16xf32>
    tpu.vector_store %arg5[%c0_6, %c0_7], %8 {strides = array<i32>} : memref<1x16xf32, #tpu.memory_space<vmem>>, vector<1x16xf32>,
    %c0_8 = arith.constant 0 : index
    %c0_9 = arith.constant 0 : index
    %10 = vector.load %arg6[%c0_8, %c0_9] : memref<1x16xf32, #tpu.memory_space<vmem>>, vector<1x16xf32>
    %11 = arith.mulf %4, %4 : vector<16x16xf32>
    %cst_10 = arith.constant dense<0.000000e+00> : vector<1x16xf32>
    %12 = tpu.matmul %5, %11, %cst_10 {dimension_numbers = #tpu.dot_dimension_numbers<[1], [1], [0], [0], [0, 0, 1, 0], [], []>, precision = #tpu.contract_precision<fp32>} : vector<1x16xf32>, vector<16x16xf32>, vector<1x16xf32> -> vector<1x16xf32>
    %13 = arith.addf %10, %12 : vector<1x16xf32>
    %c0_11 = arith.constant 0 : index
    %c0_12 = arith.constant 0 : index
    %14 = vector.load %arg6[%c0_11, %c0_12] : memref<1x16xf32, #tpu.memory_space<vmem>>, vector<1x16xf32>
    tpu.vector_store %arg6[%c0_11, %c0_12], %13 {strides = array<i32>} : memref<1x16xf32, #tpu.memory_space<vmem>>, vector<1x16xf32>,
    %c0_i32_13 = arith.constant 0 : i32
    %15 = arith.cmpi eq, %arg2, %c0_i32_13 : i32
    %16 = arith.extui %15 : i1 to i32
    %c0_i32_14 = arith.constant 0 : i32
    %17 = arith.cmpi ne, %16, %c0_i32_14 : i32
    scf.if %17 {
      %c0_15 = arith.constant 0 : index
      %c0_16 = arith.constant 0 : index
      %18 = vector.load %arg5[%c0_15, %c0_16] : memref<1x16xf32, #tpu.memory_space<vmem>>, vector<1x16xf32>
      %cst_17 = arith.constant 6.250000e-02 : f32
      %19 = vector.broadcast %cst_17 : f32 to vector<1x16xf32>
      %20 = arith.mulf %18, %19 : vector<1x16xf32>
      %c0_18 = arith.constant 0 : index
      %c0_19 = arith.constant 0 : index
      %21 = vector.load %arg6[%c0_18, %c0_19] : memref<1x16xf32, #tpu.memory_space<vmem>>, vector<1x16xf32>
      %22 = arith.mulf %18, %20 : vector<1x16xf32>
      %23 = arith.subf %21, %22 : vector<1x16xf32>
      %cst_20 = arith.constant 0.0666666701 : f32
      %24 = vector.broadcast %cst_20 : f32 to vector<1x16xf32>
      %25 = arith.mulf %23, %24 : vector<1x16xf32>
      %cst_21 = arith.constant 0.000000e+00 : f32
      %26 = vector.broadcast %cst_21 : f32 to vector<1x16xf32>
      %27 = arith.maximumf %25, %26 : vector<1x16xf32>
      %28 = math.sqrt %27 : vector<1x16xf32>
      %29 = vector.shape_cast %20 : vector<1x16xf32> to vector<16xf32>
      %c0_22 = arith.constant 0 : index
      %c0_23 = arith.constant 0 : index
      %c0_24 = arith.constant 0 : index
      %30 = vector.load %arg4[%c0_22, %c0_23, %c0_24] : memref<1x2x16xf32, #tpu.memory_space<vmem>>, vector<1x1x16xf32>
      %31 = vector.shape_cast %30 : vector<1x1x16xf32> to vector<16xf32>
      %32 = vector.shape_cast %29 : vector<16xf32> to vector<1x1x16xf32>
      tpu.vector_store %arg4[%c0_22, %c0_23, %c0_24], %32 {strides = array<i32>} : memref<1x2x16xf32, #tpu.memory_space<vmem>>, vector<1x1x16xf32>,
      %33 = vector.shape_cast %28 : vector<1x16xf32> to vector<16xf32>
      %c0_25 = arith.constant 0 : index
      %c1 = arith.constant 1 : index
      %c0_26 = arith.constant 0 : index
      %34 = vector.load %arg4[%c0_25, %c1, %c0_26] : memref<1x2x16xf32, #tpu.memory_space<vmem>>, vector<1x1x16xf32>
      %35 = vector.shape_cast %34 : vector<1x1x16xf32> to vector<16xf32>
      %36 = vector.shape_cast %33 : vector<16xf32> to vector<1x1x16xf32>
      tpu.vector_store %arg4[%c0_25, %c1, %c0_26], %36 {strides = array<i32>} : memref<1x2x16xf32, #tpu.memory_space<vmem>>, vector<1x1x16xf32>,
    } else {
    }
    return
  }
  func.func @transform_0(%arg0: i32, %arg1: i32, %arg2: i32) -> (i32, i32, i32) {
    %c0_i32 = arith.constant 0 : i32
    return %arg0, %arg1, %arg2 : i32, i32, i32
  }
  func.func @transform_1(%arg0: i32, %arg1: i32, %arg2: i32) -> (i32, i32, i32) {
    %c0_i32 = arith.constant 0 : i32
    %c0_i32_0 = arith.constant 0 : i32
    return %arg0, %c0_i32, %arg1 : i32, i32, i32
  }
}

</mosaic_0001>

<llo_original>
// kernel: tpu_custom_call.1
$region0: #{tpu_custom_call.1}
  #allocation0 [shape = 'u32[]', space=smem, size = 0x4, offset = 0x4, fixed_abs, tag = 'smem constant byte address 0x4 - core index']
  #allocation1 [shape = 'u32[144,128]{1,0:T(1,128)}', space=vmem, size = 0x12000, scoped, tag = 'internal scratch']
  #allocation2 [shape = 'f32[1,16]{1,0:T(1,128)}', space=vmem, size = 0x200, scoped, tag = 'scratch operand']
  #allocation3 [shape = 'f32[1,16]{1,0:T(1,128)}', space=vmem, size = 0x200, scoped, tag = 'scratch operand']
  %s0 = inlined_call_operand.hbm [shape: f32[2,16,16], index: 0, kind: input, shape index: {}]
  %s1 = inlined_call_operand.hbm [shape: f32[2,2,16], index: 1, kind: output, shape index: {}]
  %s2 = sld [smem:[#allocation0]]
  $region49: #{tpu_custom_call.1} parent=0
    _
  %s4 = ssub.s32 1, %s2
  %s5 = scalar_select 0, %s4, %s2
  $region1: #{tpu_custom_call.1} parent=0
    #allocation4 [shape = 'u8[16384]{0}', space=vmem, size = 0x4000, scoped, tag = 'input window, operand 0']
    #allocation5 [shape = 's32[2]{0}', space=sflag, size = 0x8, scoped, tag = 'scoped memory for tpu_custom_call.1']
    #allocation6 [shape = 's32[2]{0}', space=sflag, size = 0x8, scoped, tag = 'scoped memory for tpu_custom_call.1']
    #allocation7 [shape = 'u8[2048]{0}', space=vmem, size = 0x800, scoped, tag = 'output window, operand 0']
    %6 = vsyncpa [#allocation5], 0
    %s7 = scalar_lea.sflag [#allocation5], 1
    %8 = vsyncpa %s7, 0
    %9 = vsyncpa [#allocation6], 0
    %s10 = scalar_lea.sflag [#allocation6], 1
    %11 = vsyncpa %s10, 0
    loop: start=0, step=1, limit=4
    $region2: #{tpu_custom_call.1} parent=1 // loop_pre_header
      _
    $region3: #{tpu_custom_call.1} parent=1 // loop_header
      %s13 = sphi 0, %s17
      %p14 = scmp.ge.s32.totalorder %s13, 4
      %s20 = sphi 0, %s39
      %s21 = sphi 0, %s35
      %s22 = sphi 0, %s31
      %s23 = sphi 0, %s20
      %s24 = sphi 0, %s21
      %s25 = sphi 0, %s22
      %s26 = sphi 0, %s23
      %s27 = sphi 0, %s24
      %s28 = sphi 0, %s25
      %s46 = sphi 0, %s48
      %s49 = sphi 0, %s46
      %s50 = sphi 0, %s49
      %s66 = sphi 0, %s50
      %s74 = sphi 0, %s76
      %s77 = sphi 0, %s74
      %s78 = sphi 0, %s77
      %s94 = sphi 0, %s78
    $region4: #{tpu_custom_call.1} parent=1 // loop_header_branch
      %16 = sbr.rel (%p14) target = $region8
    $region5: #{tpu_custom_call.1} parent=1 // loop_body
      %s18 = ssub.s32 %s13, 1
      %s19 = ssub.s32 %s13, 2
      %s29 = sadd.s32 1, %s22
      %p30 = scmp.ge.s32.totalorder %s29, 1
      %s31 = scalar_select %p30, 0, %s29
      %s32 = sadd.s32 1, %s21
      %s33 = scalar_select %p30, %s32, %s21
      %p34 = scmp.ge.s32.totalorder %s33, 1
      %s35 = scalar_select %p34, 0, %s33
      %s36 = sadd.s32 1, %s20
      %s37 = scalar_select %p34, %s36, %s20
      %p38 = scmp.ge.s32.totalorder %s37, 2
      %s39 = scalar_select %p38, 0, %s37
      %s40 = ssub.s32 %s20, %s39
      %s41 = ssub.s32 %s21, %s35
      %s42 = sor.u32 %s40, %s41
      %s43 = ssub.s32 %s22, %s31
      %s44 = sor.u32 %s42, %s43
      %p45 = scmp.eq.s32.totalorder %s44, 0
      %s47 = sadd.s32 %s46, 1
      %s48 = scalar_select %p45, %s46, %s47
      %p51 = pneg %p45
      %p52 = scmp.eq.s32.totalorder %s13, 1
      %p53 = por %p51, %p52
      %p54 = scmp.ne.s32.totalorder %s46, %s49
      %p55 = scmp.eq.s32.totalorder %s13, 0
      %p56 = por %p54, %p55
      %p57 = scmp.ne.s32.totalorder %s46, %s49
      %p58 = scmp.eq.s32.totalorder %s18, 1
      %p59 = por %p57, %p58
      %p60 = scmp.ne.s32.totalorder %s49, %s50
      %p61 = scmp.eq.s32.totalorder %s18, 0
      %p62 = por %p60, %p61
      %p63 = scmp.ne.s32.totalorder %s49, %s50
      %p64 = scmp.eq.s32.totalorder %s19, 1
      %p65 = por %p63, %p64
      %p67 = scmp.ne.s32.totalorder %s50, %s66
      %p68 = scmp.eq.s32.totalorder %s19, 0
      %p69 = por %p67, %p68
      %s70 = ssub.s32 %s20, %s39
      %s71 = ssub.s32 %s21, %s35
      %s72 = sor.u32 %s70, %s71
      %p73 = scmp.eq.s32.totalorder %s72, 0
      %s75 = sadd.s32 %s74, 1
      %s76 = scalar_select %p73, %s74, %s75
      %p79 = pneg %p73
      %p80 = scmp.eq.s32.totalorder %s13, 1
      %p81 = por %p79, %p80
      %p82 = scmp.ne.s32.totalorder %s74, %s77
      %p83 = scmp.eq.s32.totalorder %s13, 0
      %p84 = por %p82, %p83
      %p85 = scmp.ne.s32.totalorder %s74, %s77
      %p86 = scmp.eq.s32.totalorder %s18, 1
      %p87 = por %p85, %p86
      %p88 = scmp.ne.s32.totalorder %s77, %s78
      %p89 = scmp.eq.s32.totalorder %s18, 0
      %p90 = por %p88, %p89
      %p91 = scmp.ne.s32.totalorder %s77, %s78
      %p92 = scmp.eq.s32.totalorder %s19, 1
      %p93 = por %p91, %p92
      %p95 = scmp.ne.s32.totalorder %s78, %s94
      %p96 = scmp.eq.s32.totalorder %s19, 0
      %p97 = por %p95, %p96
      %p98 = scmp.le.s32.totalorder 1, %s13
      %p99 = scmp.lt.s32.totalorder %s13, 3
      %p100 = pnand %p98, %p99
      %p101 = pneg %p100
      // Predicated region
      $region9: #{tpu_custom_call.1} parent=5 // pred_check
        _
      $region10: #{tpu_custom_call.1} parent=5 // pred_check_branch
        %103 = sbr.rel (%p100) target = $region12
      $region11: #{tpu_custom_call.1} parent=5 // pred_region
        %s104 = ssub.s32 %s13, 1
      $region12: #{tpu_custom_call.1} parent=5 // pred_fallthru
        _
      %p105 = scmp.lt.s32.totalorder %s13, 2
      // Predicated region
      $region13: #{tpu_custom_call.1} parent=5 // pred_check
        %p106 = pneg %p105
      $region14: #{tpu_custom_call.1} parent=5 // pred_check_branch
        %108 = sbr.rel (%p106) target = $region16
      $region15: #{tpu_custom_call.1} parent=5 // pred_region
        // Predicated region
        $region17: #{tpu_custom_call.1} parent=15 // pred_check
          %p109 = pneg %p56
        $region18: #{tpu_custom_call.1} parent=15 // pred_check_branch
          %111 = sbr.rel (%p109) target = $region20
        $region19: #{tpu_custom_call.1} parent=15 // pred_region
          %s112 = sand.u32 %s46, 1
          %s113 = scalar_lea.sflag [#allocation5], %s112
          %s114 = sand.u32 %s46, 1
          %s115 = smul.addr %s114, 16
          %s116 = scalar_lea.vmem [#allocation4], %s115
          %s117 = smul.u32 2, %s21
          %s119 = ssub.s32 256, 256
          %120 = vsyncadd %s113, %s119
          %s121 = sadd.s32 %s22, %s117
          %s122 = smul.addr %s20, 2
          %s123 = sadd.s32 %s121, %s122
          %s124 = smul.addr %s123, 128
          %s125 = scalar_lea.hbm %s0, %s124
          %s126 = sshll.u32 %s116, 4
          %s127 = int_to_ptr.vmem [resolvable:$true] %s126
          %132 = dma.hbm_to_vmem [thread:$0]  %s125, 256, %s127, %s113, 128, 128, 8
        $region20: #{tpu_custom_call.1} parent=15 // pred_fallthru
          _
      $region16: #{tpu_custom_call.1} parent=5 // pred_fallthru
        _
      %p133 = scmp.le.s32.totalorder 1, %s13
      %p134 = scmp.lt.s32.totalorder %s13, 3
      %p135 = pnand %p133, %p134
      %p136 = pneg %p135
      // Predicated region
      $region21: #{tpu_custom_call.1} parent=5 // pred_check
        _
      $region22: #{tpu_custom_call.1} parent=5 // pred_check_branch
        %138 = sbr.rel (%p135) target = $region24
      $region23: #{tpu_custom_call.1} parent=5 // pred_region
        %s139 = ssub.s32 %s13, 1
        %s140 = sand.u32 %s49, 1
        %s141 = scalar_lea.sflag [#allocation5], %s140
        %s142 = sand.u32 %s49, 1
        %s143 = smul.addr %s142, 16
        %s144 = scalar_lea.vmem [#allocation4], %s143
        // Predicated region
        $region25: #{tpu_custom_call.1} parent=23 // pred_check
          %p145 = pneg %p62
        $region26: #{tpu_custom_call.1} parent=23 // pred_check_branch
          %147 = sbr.rel (%p145) target = $region28
        $region27: #{tpu_custom_call.1} parent=23 // pred_region
          %148 = dma.done %s141, 256
        $region28: #{tpu_custom_call.1} parent=23 // pred_fallthru
          _
        %s149 = sand.u32 %s49, 1
        %s150 = scalar_lea.sflag [#allocation5], %s149
        %s151 = sand.u32 %s49, 1
        %s152 = smul.addr %s151, 16
        %s153 = scalar_lea.vmem [#allocation4], %s152
        %p154 = pneg %p62
        %p155 = pneg %p59
        %p156 = pneg %p90
        %p157 = pneg %p87
        %s158 = sand.u32 %s77, 1
        %s159 = scalar_lea.sflag [#allocation6], %s158
        %s160 = sand.u32 %s77, 1
        %s161 = smul.addr %s160, 2
        %s162 = scalar_lea.vmem [#allocation7], %s161
        %s163 = smul.u32 2, %s24
        %p164 = scmp.eq.s32.totalorder %s25, 0
        // Predicated region
        $region29: #{tpu_custom_call.1} parent=23 // pred_check
          %p165 = pneg %p164
        $region30: #{tpu_custom_call.1} parent=23 // pred_check_branch
          %167 = sbr.rel (%p165) target = $region32
        $region31: #{tpu_custom_call.1} parent=23 // pred_region
          %vm168 = vcmask 122880
          %169 = vst.msk [vmem:[#allocation2] sm:$0x1] %vm168, 0.0
          %170 = vst.msk [vmem:[#allocation3] sm:$0x1] %vm168, 0.0
        $region32: #{tpu_custom_call.1} parent=23 // pred_fallthru
          _
        %v171 = vld [vmem:[%s144] sm:$0xff]
        %v172 = vld [vmem:[%s144 + $0x8] sm:$0xff]
        %v173 = vld [vmem:[#allocation2] sm:$0x1]
        %vm174 = vcmask 130048
        %v176 = vsel %vm174, 1.0, 0
        %v179 = vsel %vm174, %v171, 0
        %v182 = vsel %vm174, %v172, 0
        %184 = vmatprep.subr.mxu0 0.0
        %v185 = vand.u32 %v179, 4294901760
        %186 = vmatpush1.xpose.msra.mxu0 %v185
        %187 = vmatprep.subr.mxu0 0.0
        %v188 = vand.u32 %v182, 4294901760
        %189 = vmatpush1.xpose.msra.mxu0 %v188
        %190 = vmatprep.subr.mxu0 0.0
        %191 = vmatpush1.xpose.msra.mxu0 0.0
        %192 = vmatprep.subr.mxu0 0.0
        %193 = vmatpush1.xpose.msra.mxu0 0.0
        %194 = vmatprep.subr.mxu0 0.0
        %195 = vmatpush1.xpose.msra.mxu0 0.0
        %196 = vmatprep.subr.mxu0 0.0
        %197 = vmatpush1.xpose.msra.mxu0 0.0
        %198 = vmatprep.subr.mxu0 0.0
        %199 = vmatpush1.xpose.msra.mxu0 0.0
        %200 = vmatprep.subr.mxu0 0.0
        %201 = vmatpush1.xpose.msra.mxu0 0.0
        %202 = vmatprep.subr.mxu0 0.0
        %203 = vmatpush1.xpose.msra.mxu0 0.0
        %204 = vmatprep.subr.mxu0 0.0
        %205 = vmatpush1.xpose.msra.mxu0 0.0
        %206 = vmatprep.subr.mxu0 0.0
        %207 = vmatpush1.xpose.msra.mxu0 0.0
        %208 = vmatprep.subr.mxu0 0.0
        %209 = vmatpush1.xpose.msra.mxu0 0.0
        %210 = vmatprep.subr.mxu0 0.0
        %211 = vmatpush1.xpose.msra.mxu0 0.0
        %212 = vmatprep.subr.mxu0 0.0
        %213 = vmatpush1.xpose.msra.mxu0 0.0
        %214 = vmatprep.subr.mxu0 0.0
        %215 = vmatpush1.xpose.msra.mxu0 0.0
        %216 = vmatprep.subr.mxu0 0.0
        %217 = vmatpush1.xpose.msra.mxu0 0.0
        %218 = vmatprep.subr.mxu0 0.0
        %219 = vmatpush1.xpose.msra.mxu0 0.0
        %220 = vmatprep.subr.mxu0 0.0
        %221 = vmatpush1.xpose.msra.mxu0 0.0
        %222 = vmatprep.subr.mxu0 0.0
        %223 = vmatpush1.xpose.msra.mxu0 0.0
        %224 = vmatprep.subr.mxu0 0.0
        %225 = vmatpush1.xpose.msra.mxu0 0.0
        %226 = vmatprep.subr.mxu0 0.0
        %227 = vmatpush1.xpose.msra.mxu0 0.0
        %228 = vmatprep.subr.mxu0 0.0
        %229 = vmatpush1.xpose.msra.mxu0 0.0
        %230 = vmatprep.subr.mxu0 0.0
        %231 = vmatpush1.xpose.msra.mxu0 0.0
        %232 = vmatprep.subr.mxu0 0.0
        %233 = vmatpush1.xpose.msra.mxu0 0.0
        %234 = vmatprep.subr.mxu0 0.0
        %235 = vmatpush1.xpose.msra.mxu0 0.0
        %236 = vmatprep.subr.mxu0 0.0
        %237 = vmatpush1.xpose.msra.mxu0 0.0
        %238 = vmatprep.subr.mxu0 0.0
        %239 = vmatpush1.xpose.msra.mxu0 0.0
        %240 = vmatprep.subr.mxu0 0.0
        %241 = vmatpush1.xpose.msra.mxu0 0.0
        %242 = vmatprep.subr.mxu0 0.0
        %243 = vmatpush1.xpose.msra.mxu0 0.0
        %244 = vmatprep.subr.mxu0 0.0
        %245 = vmatpush1.xpose.msra.mxu0 0.0
        %246 = vmatprep.subr.mxu0 0.0
        %247 = vmatpush1.xpose.msra.mxu0 0.0
        %248 = vmatprep.subr.mxu0 0.0
        %249 = vmatpush1.xpose.msra.mxu0 0.0
        %250 = vmatprep.mubr.f32.mxu0 0.0
        %v251 = vand.u32 %v176, 4294901760
        %v252 = vsub.f32 %v176, %v251
        %v253 = vand.u32 %v252, 4294901760
        %v254 = vsub.f32 %v252, %v253
        %v255 = vand.u32 %v254, 4294901760
        %256 = vmatmul.mubr.f32.gmra.mrb[0].mxu0 %v255
        %v257 = vpop.f32.mrb[0].mxu0
        %v258 = vadd.f32 0.0, %v257
        %v259 = vpop.f32.mrb[0].mxu0
        %260 = vdwg.mxu0
        %261 = vmatprep.subr.mxu0 0.0
        %v262 = vand.u32 %v179, 4294901760
        %v263 = vsub.f32 %v179, %v262
        %v264 = vand.u32 %v263, 4294901760
        %v265 = vsub.f32 %v263, %v264
        %v266 = vand.u32 %v265, 4294901760
        %267 = vmatpush1.xpose.msra.mxu0 %v266
        %268 = vmatprep.subr.mxu0 0.0
        %v269 = vand.u32 %v182, 4294901760
        %v270 = vsub.f32 %v182, %v269
        %v271 = vand.u32 %v270, 4294901760
        %v272 = vsub.f32 %v270, %v271
        %v273 = vand.u32 %v272, 4294901760
        %274 = vmatpush1.xpose.msra.mxu0 %v273
        %275 = vmatprep.subr.mxu0 0.0
        %276 = vmatpush1.xpose.msra.mxu0 0.0
        %277 = vmatprep.subr.mxu0 0.0
        %278 = vmatpush1.xpose.msra.mxu0 0.0
        %279 = vmatprep.subr.mxu0 0.0
        %280 = vmatpush1.xpose.msra.mxu0 0.0
        %281 = vmatprep.subr.mxu0 0.0
        %282 = vmatpush1.xpose.msra.mxu0 0.0
        %283 = vmatprep.subr.mxu0 0.0
        %284 = vmatpush1.xpose.msra.mxu0 0.0
        %285 = vmatprep.subr.mxu0 0.0
        %286 = vmatpush1.xpose.msra.mxu0 0.0
        %287 = vmatprep.subr.mxu0 0.0
        %288 = vmatpush1.xpose.msra.mxu0 0.0
        %289 = vmatprep.subr.mxu0 0.0
        %290 = vmatpush1.xpose.msra.mxu0 0.0
        %291 = vmatprep.subr.mxu0 0.0
        %292 = vmatpush1.xpose.msra.mxu0 0.0
        %293 = vmatprep.subr.mxu0 0.0
        %294 = vmatpush1.xpose.msra.mxu0 0.0
        %295 = vmatprep.subr.mxu0 0.0
        %296 = vmatpush1.xpose.msra.mxu0 0.0
        %297 = vmatprep.subr.mxu0 0.0
        %298 = vmatpush1.xpose.msra.mxu0 0.0
        %299 = vmatprep.subr.mxu0 0.0
        %300 = vmatpush1.xpose.msra.mxu0 0.0
        %301 = vmatprep.subr.mxu0 0.0
        %302 = vmatpush1.xpose.msra.mxu0 0.0
        %303 = vmatprep.subr.mxu0 0.0
        %304 = vmatpush1.xpose.msra.mxu0 0.0
        %305 = vmatprep.subr.mxu0 0.0
        %306 = vmatpush1.xpose.msra.mxu0 0.0
        %307 = vmatprep.subr.mxu0 0.0
        %308 = vmatpush1.xpose.msra.mxu0 0.0
        %309 = vmatprep.subr.mxu0 0.0
        %310 = vmatpush1.xpose.msra.mxu0 0.0
        %311 = vmatprep.subr.mxu0 0.0
        %312 = vmatpush1.xpose.msra.mxu0 0.0
        %313 = vmatprep.subr.mxu0 0.0
        %314 = vmatpush1.xpose.msra.mxu0 0.0
        %315 = vmatprep.subr.mxu0 0.0
        %316 = vmatpush1.xpose.msra.mxu0 0.0
        %317 = vmatprep.subr.mxu0 0.0
        %318 = vmatpush1.xpose.msra.mxu0 0.0
        %319 = vmatprep.subr.mxu0 0.0
        %320 = vmatpush1.xpose.msra.mxu0 0.0
        %321 = vmatprep.subr.mxu0 0.0
        %322 = vmatpush1.xpose.msra.mxu0 0.0
        %323 = vmatprep.subr.mxu0 0.0
        %324 = vmatpush1.xpose.msra.mxu0 0.0
        %325 = vmatprep.subr.mxu0 0.0
        %326 = vmatpush1.xpose.msra.mxu0 0.0
        %327 = vmatprep.subr.mxu0 0.0
        %328 = vmatpush1.xpose.msra.mxu0 0.0
        %329 = vmatprep.subr.mxu0 0.0
        %330 = vmatpush1.xpose.msra.mxu0 0.0
        %331 = vmatprep.subr.mxu0 0.0
        %332 = vmatpush1.xpose.msra.mxu0 0.0
        %333 = vmatprep.subr.mxu0 0.0
        %334 = vmatpush1.xpose.msra.mxu0 0.0
        %335 = vmatprep.mubr.f32.mxu0 0.0
        %v336 = vand.u32 %v176, 4294901760
        %337 = vmatmul.mubr.f32.gmra.mrb[0].mxu0 %v336
        %v338 = vpop.f32.mrb[0].mxu0
        %v339 = vadd.f32 %v258, %v338
        %v340 = vpop.f32.mrb[0].mxu0
        %341 = vdwg.mxu0
        %342 = vmatprep.subr.mxu0 0.0
        %v343 = vand.u32 %v179, 4294901760
        %v344 = vsub.f32 %v179, %v343
        %345 = vmatpush1.xpose.msra.mxu0 %v344
        %346 = vmatprep.subr.mxu0 0.0
        %v347 = vand.u32 %v182, 4294901760
        %v348 = vsub.f32 %v182, %v347
        %349 = vmatpush1.xpose.msra.mxu0 %v348
        %350 = vmatprep.subr.mxu0 0.0
        %351 = vmatpush1.xpose.msra.mxu0 0.0
        %352 = vmatprep.subr.mxu0 0.0
        %353 = vmatpush1.xpose.msra.mxu0 0.0
        %354 = vmatprep.subr.mxu0 0.0
        %355 = vmatpush1.xpose.msra.mxu0 0.0
        %356 = vmatprep.subr.mxu0 0.0
        %357 = vmatpush1.xpose.msra.mxu0 0.0
        %358 = vmatprep.subr.mxu0 0.0
        %359 = vmatpush1.xpose.msra.mxu0 0.0
        %360 = vmatprep.subr.mxu0 0.0
        %361 = vmatpush1.xpose.msra.mxu0 0.0
        %362 = vmatprep.subr.mxu0 0.0
        %363 = vmatpush1.xpose.msra.mxu0 0.0
        %364 = vmatprep.subr.mxu0 0.0
        %365 = vmatpush1.xpose.msra.mxu0 0.0
        %366 = vmatprep.subr.mxu0 0.0
        %367 = vmatpush1.xpose.msra.mxu0 0.0
        %368 = vmatprep.subr.mxu0 0.0
        %369 = vmatpush1.xpose.msra.mxu0 0.0
        %370 = vmatprep.subr.mxu0 0.0
        %371 = vmatpush1.xpose.msra.mxu0 0.0
        %372 = vmatprep.subr.mxu0 0.0
        %373 = vmatpush1.xpose.msra.mxu0 0.0
        %374 = vmatprep.subr.mxu0 0.0
        %375 = vmatpush1.xpose.msra.mxu0 0.0
        %376 = vmatprep.subr.mxu0 0.0
        %377 = vmatpush1.xpose.msra.mxu0 0.0
        %378 = vmatprep.subr.mxu0 0.0
        %379 = vmatpush1.xpose.msra.mxu0 0.0
        %380 = vmatprep.subr.mxu0 0.0
        %381 = vmatpush1.xpose.msra.mxu0 0.0
        %382 = vmatprep.subr.mxu0 0.0
        %383 = vmatpush1.xpose.msra.mxu0 0.0
        %384 = vmatprep.subr.mxu0 0.0
        %385 = vmatpush1.xpose.msra.mxu0 0.0
        %386 = vmatprep.subr.mxu0 0.0
        %387 = vmatpush1.xpose.msra.mxu0 0.0
        %388 = vmatprep.subr.mxu0 0.0
        %389 = vmatpush1.xpose.msra.mxu0 0.0
        %390 = vmatprep.subr.mxu0 0.0
        %391 = vmatpush1.xpose.msra.mxu0 0.0
        %392 = vmatprep.subr.mxu0 0.0
        %393 = vmatpush1.xpose.msra.mxu0 0.0
        %394 = vmatprep.subr.mxu0 0.0
        %395 = vmatpush1.xpose.msra.mxu0 0.0
        %396 = vmatprep.subr.mxu0 0.0
        %397 = vmatpush1.xpose.msra.mxu0 0.0
        %398 = vmatprep.subr.mxu0 0.0
        %399 = vmatpush1.xpose.msra.mxu0 0.0
        %400 = vmatprep.subr.mxu0 0.0
        %401 = vmatpush1.xpose.msra.mxu0 0.0
        %402 = vmatprep.subr.mxu0 0.0
        %403 = vmatpush1.xpose.msra.mxu0 0.0
        %404 = vmatprep.subr.mxu0 0.0
        %405 = vmatpush1.xpose.msra.mxu0 0.0
        %406 = vmatprep.subr.mxu0 0.0
        %407 = vmatpush1.xpose.msra.mxu0 0.0
        %408 = vmatprep.subr.mxu0 0.0
        %409 = vmatpush1.xpose.msra.mxu0 0.0
        %410 = vmatprep.mubr.f32.mxu0 0.0
        %v411 = vand.u32 %v176, 4294901760
        %v412 = vsub.f32 %v176, %v411
        %413 = vmatmul.mubr.f32.gmra.mrb[0].mxu0 %v412
        %v414 = vpop.f32.mrb[0].mxu0
        %v415 = vadd.f32 %v339, %v414
        %v416 = vpop.f32.mrb[0].mxu0
        %417 = vdwg.mxu0
        %418 = vmatprep.subr.mxu0 0.0
        %v419 = vand.u32 %v179, 4294901760
        %420 = vmatpush1.xpose.msra.mxu0 %v419
        %421 = vmatprep.subr.mxu0 0.0
        %v422 = vand.u32 %v182, 4294901760
        %423 = vmatpush1.xpose.msra.mxu0 %v422
        %424 = vmatprep.subr.mxu0 0.0
        %425 = vmatpush1.xpose.msra.mxu0 0.0
        %426 = vmatprep.subr.mxu0 0.0
        %427 = vmatpush1.xpose.msra.mxu0 0.0
        %428 = vmatprep.subr.mxu0 0.0
        %429 = vmatpush1.xpose.msra.mxu0 0.0
        %430 = vmatprep.subr.mxu0 0.0
        %431 = vmatpush1.xpose.msra.mxu0 0.0
        %432 = vmatprep.subr.mxu0 0.0
        %433 = vmatpush1.xpose.msra.mxu0 0.0
        %434 = vmatprep.subr.mxu0 0.0
        %435 = vmatpush1.xpose.msra.mxu0 0.0
        %436 = vmatprep.subr.mxu0 0.0
        %437 = vmatpush1.xpose.msra.mxu0 0.0
        %438 = vmatprep.subr.mxu0 0.0
        %439 = vmatpush1.xpose.msra.mxu0 0.0
        %440 = vmatprep.subr.mxu0 0.0
        %441 = vmatpush1.xpose.msra.mxu0 0.0
        %442 = vmatprep.subr.mxu0 0.0
        %443 = vmatpush1.xpose.msra.mxu0 0.0
        %444 = vmatprep.subr.mxu0 0.0
        %445 = vmatpush1.xpose.msra.mxu0 0.0
        %446 = vmatprep.subr.mxu0 0.0
        %447 = vmatpush1.xpose.msra.mxu0 0.0
        %448 = vmatprep.subr.mxu0 0.0
        %449 = vmatpush1.xpose.msra.mxu0 0.0
        %450 = vmatprep.subr.mxu0 0.0
        %451 = vmatpush1.xpose.msra.mxu0 0.0
        %452 = vmatprep.subr.mxu0 0.0
        %453 = vmatpush1.xpose.msra.mxu0 0.0
        %454 = vmatprep.subr.mxu0 0.0
        %455 = vmatpush1.xpose.msra.mxu0 0.0
        %456 = vmatprep.subr.mxu0 0.0
        %457 = vmatpush1.xpose.msra.mxu0 0.0
        %458 = vmatprep.subr.mxu0 0.0
        %459 = vmatpush1.xpose.msra.mxu0 0.0
        %460 = vmatprep.subr.mxu0 0.0
        %461 = vmatpush1.xpose.msra.mxu0 0.0
        %462 = vmatprep.subr.mxu0 0.0
        %463 = vmatpush1.xpose.msra.mxu0 0.0
        %464 = vmatprep.subr.mxu0 0.0
        %465 = vmatpush1.xpose.msra.mxu0 0.0
        %466 = vmatprep.subr.mxu0 0.0
        %467 = vmatpush1.xpose.msra.mxu0 0.0
        %468 = vmatprep.subr.mxu0 0.0
        %469 = vmatpush1.xpose.msra.mxu0 0.0
        %470 = vmatprep.subr.mxu0 0.0
        %471 = vmatpush1.xpose.msra.mxu0 0.0
        %472 = vmatprep.subr.mxu0 0.0
        %473 = vmatpush1.xpose.msra.mxu0 0.0
        %474 = vmatprep.subr.mxu0 0.0
        %475 = vmatpush1.xpose.msra.mxu0 0.0
        %476 = vmatprep.subr.mxu0 0.0
        %477 = vmatpush1.xpose.msra.mxu0 0.0
        %478 = vmatprep.subr.mxu0 0.0
        %479 = vmatpush1.xpose.msra.mxu0 0.0
        %480 = vmatprep.subr.mxu0 0.0
        %481 = vmatpush1.xpose.msra.mxu0 0.0
        %482 = vmatprep.subr.mxu0 0.0
        %483 = vmatpush1.xpose.msra.mxu0 0.0
        %484 = vmatprep.mubr.f32.mxu0 0.0
        %v485 = vand.u32 %v176, 4294901760
        %v486 = vsub.f32 %v176, %v485
        %v487 = vand.u32 %v486, 4294901760
        %488 = vmatmul.mubr.f32.gmra.mrb[0].mxu0 %v487
        %v489 = vpop.f32.mrb[0].mxu0
        %v490 = vadd.f32 %v415, %v489
        %v491 = vpop.f32.mrb[0].mxu0
        %492 = vdwg.mxu0
        %493 = vmatprep.subr.mxu0 0.0
        %v494 = vand.u32 %v179, 4294901760
        %v495 = vsub.f32 %v179, %v494
        %v496 = vand.u32 %v495, 4294901760
        %497 = vmatpush1.xpose.msra.mxu0 %v496
        %498 = vmatprep.subr.mxu0 0.0
        %v499 = vand.u32 %v182, 4294901760
        %v500 = vsub.f32 %v182, %v499
        %v501 = vand.u32 %v500, 4294901760
        %502 = vmatpush1.xpose.msra.mxu0 %v501
        %503 = vmatprep.subr.mxu0 0.0
        %504 = vmatpush1.xpose.msra.mxu0 0.0
        %505 = vmatprep.subr.mxu0 0.0
        %506 = vmatpush1.xpose.msra.mxu0 0.0
        %507 = vmatprep.subr.mxu0 0.0
        %508 = vmatpush1.xpose.msra.mxu0 0.0
        %509 = vmatprep.subr.mxu0 0.0
        %510 = vmatpush1.xpose.msra.mxu0 0.0
        %511 = vmatprep.subr.mxu0 0.0
        %512 = vmatpush1.xpose.msra.mxu0 0.0
        %513 = vmatprep.subr.mxu0 0.0
        %514 = vmatpush1.xpose.msra.mxu0 0.0
        %515 = vmatprep.subr.mxu0 0.0
        %516 = vmatpush1.xpose.msra.mxu0 0.0
        %517 = vmatprep.subr.mxu0 0.0
        %518 = vmatpush1.xpose.msra.mxu0 0.0
        %519 = vmatprep.subr.mxu0 0.0
        %520 = vmatpush1.xpose.msra.mxu0 0.0
        %521 = vmatprep.subr.mxu0 0.0
        %522 = vmatpush1.xpose.msra.mxu0 0.0
        %523 = vmatprep.subr.mxu0 0.0
        %524 = vmatpush1.xpose.msra.mxu0 0.0
        %525 = vmatprep.subr.mxu0 0.0
        %526 = vmatpush1.xpose.msra.mxu0 0.0
        %527 = vmatprep.subr.mxu0 0.0
        %528 = vmatpush1.xpose.msra.mxu0 0.0
        %529 = vmatprep.subr.mxu0 0.0
        %530 = vmatpush1.xpose.msra.mxu0 0.0
        %531 = vmatprep.subr.mxu0 0.0
        %532 = vmatpush1.xpose.msra.mxu0 0.0
        %533 = vmatprep.subr.mxu0 0.0
        %534 = vmatpush1.xpose.msra.mxu0 0.0
        %535 = vmatprep.subr.mxu0 0.0
        %536 = vmatpush1.xpose.msra.mxu0 0.0
        %537 = vmatprep.subr.mxu0 0.0
        %538 = vmatpush1.xpose.msra.mxu0 0.0
        %539 = vmatprep.subr.mxu0 0.0
        %540 = vmatpush1.xpose.msra.mxu0 0.0
        %541 = vmatprep.subr.mxu0 0.0
        %542 = vmatpush1.xpose.msra.mxu0 0.0
        %543 = vmatprep.subr.mxu0 0.0
        %544 = vmatpush1.xpose.msra.mxu0 0.0
        %545 = vmatprep.subr.mxu0 0.0
        %546 = vmatpush1.xpose.msra.mxu0 0.0
        %547 = vmatprep.subr.mxu0 0.0
        %548 = vmatpush1.xpose.msra.mxu0 0.0
        %549 = vmatprep.subr.mxu0 0.0
        %550 = vmatpush1.xpose.msra.mxu0 0.0
        %551 = vmatprep.subr.mxu0 0.0
        %552 = vmatpush1.xpose.msra.mxu0 0.0
        %553 = vmatprep.subr.mxu0 0.0
        %554 = vmatpush1.xpose.msra.mxu0 0.0
        %555 = vmatprep.subr.mxu0 0.0
        %556 = vmatpush1.xpose.msra.mxu0 0.0
        %557 = vmatprep.subr.mxu0 0.0
        %558 = vmatpush1.xpose.msra.mxu0 0.0
        %559 = vmatprep.subr.mxu0 0.0
        %560 = vmatpush1.xpose.msra.mxu0 0.0
        %561 = vmatprep.subr.mxu0 0.0
        %562 = vmatpush1.xpose.msra.mxu0 0.0
        %563 = vmatprep.mubr.f32.mxu0 0.0
        %v564 = vand.u32 %v176, 4294901760
        %565 = vmatmul.mubr.f32.gmra.mrb[0].mxu0 %v564
        %v566 = vpop.f32.mrb[0].mxu0
        %v567 = vadd.f32 %v490, %v566
        %v568 = vpop.f32.mrb[0].mxu0
        %569 = vdwg.mxu0
        %570 = vmatprep.subr.mxu0 0.0
        %v571 = vand.u32 %v179, 4294901760
        %572 = vmatpush1.xpose.msra.mxu0 %v571
        %573 = vmatprep.subr.mxu0 0.0
        %v574 = vand.u32 %v182, 4294901760
        %575 = vmatpush1.xpose.msra.mxu0 %v574
        %576 = vmatprep.subr.mxu0 0.0
        %577 = vmatpush1.xpose.msra.mxu0 0.0
        %578 = vmatprep.subr.mxu0 0.0
        %579 = vmatpush1.xpose.msra.mxu0 0.0
        %580 = vmatprep.subr.mxu0 0.0
        %581 = vmatpush1.xpose.msra.mxu0 0.0
        %582 = vmatprep.subr.mxu0 0.0
        %583 = vmatpush1.xpose.msra.mxu0 0.0
        %584 = vmatprep.subr.mxu0 0.0
        %585 = vmatpush1.xpose.msra.mxu0 0.0
        %586 = vmatprep.subr.mxu0 0.0
        %587 = vmatpush1.xpose.msra.mxu0 0.0
        %588 = vmatprep.subr.mxu0 0.0
        %589 = vmatpush1.xpose.msra.mxu0 0.0
        %590 = vmatprep.subr.mxu0 0.0
        %591 = vmatpush1.xpose.msra.mxu0 0.0
        %592 = vmatprep.subr.mxu0 0.0
        %593 = vmatpush1.xpose.msra.mxu0 0.0
        %594 = vmatprep.subr.mxu0 0.0
        %595 = vmatpush1.xpose.msra.mxu0 0.0
        %596 = vmatprep.subr.mxu0 0.0
        %597 = vmatpush1.xpose.msra.mxu0 0.0
        %598 = vmatprep.subr.mxu0 0.0
        %599 = vmatpush1.xpose.msra.mxu0 0.0
        %600 = vmatprep.subr.mxu0 0.0
        %601 = vmatpush1.xpose.msra.mxu0 0.0
        %602 = vmatprep.subr.mxu0 0.0
        %603 = vmatpush1.xpose.msra.mxu0 0.0
        %604 = vmatprep.subr.mxu0 0.0
        %605 = vmatpush1.xpose.msra.mxu0 0.0
        %606 = vmatprep.subr.mxu0 0.0
        %607 = vmatpush1.xpose.msra.mxu0 0.0
        %608 = vmatprep.subr.mxu0 0.0
        %609 = vmatpush1.xpose.msra.mxu0 0.0
        %610 = vmatprep.subr.mxu0 0.0
        %611 = vmatpush1.xpose.msra.mxu0 0.0
        %612 = vmatprep.subr.mxu0 0.0
        %613 = vmatpush1.xpose.msra.mxu0 0.0
        %614 = vmatprep.subr.mxu0 0.0
        %615 = vmatpush1.xpose.msra.mxu0 0.0
        %616 = vmatprep.subr.mxu0 0.0
        %617 = vmatpush1.xpose.msra.mxu0 0.0
        %618 = vmatprep.subr.mxu0 0.0
        %619 = vmatpush1.xpose.msra.mxu0 0.0
        %620 = vmatprep.subr.mxu0 0.0
        %621 = vmatpush1.xpose.msra.mxu0 0.0
        %622 = vmatprep.subr.mxu0 0.0
        %623 = vmatpush1.xpose.msra.mxu0 0.0
        %624 = vmatprep.subr.mxu0 0.0
        %625 = vmatpush1.xpose.msra.mxu0 0.0
        %626 = vmatprep.subr.mxu0 0.0
        %627 = vmatpush1.xpose.msra.mxu0 0.0
        %628 = vmatprep.subr.mxu0 0.0
        %629 = vmatpush1.xpose.msra.mxu0 0.0
        %630 = vmatprep.subr.mxu0 0.0
        %631 = vmatpush1.xpose.msra.mxu0 0.0
        %632 = vmatprep.subr.mxu0 0.0
        %633 = vmatpush1.xpose.msra.mxu0 0.0
        %634 = vmatprep.subr.mxu0 0.0
        %635 = vmatpush1.xpose.msra.mxu0 0.0
        %636 = vmatprep.mubr.f32.mxu0 0.0
        %v637 = vand.u32 %v176, 4294901760
        %638 = vmatmul.mubr.f32.gmra.mrb[0].mxu0 %v637
        %v639 = vpop.f32.mrb[0].mxu0
        %v640 = vadd.f32 %v567, %v639
        %v641 = vpop.f32.mrb[0].mxu0
        %642 = vdwg.mxu0
        %v643 = vadd.f32 %v173, %v640
        %vm644 = vcmask 122880
        %645 = vst.msk [vmem:[#allocation2] sm:$0x1] %vm644, %v643
        %v646 = vld [vmem:[#allocation3] sm:$0x1]
        %v647 = vmul.f32 %v171, %v171
        %v648 = vmul.f32 %v172, %v172
        %v650 = vsel %vm174, %v647, 0
        %v653 = vsel %vm174, %v648, 0
        %655 = vmatprep.subr.mxu0 0.0
        %v656 = vand.u32 %v650, 4294901760
        %657 = vmatpush1.xpose.msra.mxu0 %v656
        %658 = vmatprep.subr.mxu0 0.0
        %v659 = vand.u32 %v653, 4294901760
        %660 = vmatpush1.xpose.msra.mxu0 %v659
        %661 = vmatprep.subr.mxu0 0.0
        %662 = vmatpush1.xpose.msra.mxu0 0.0
        %663 = vmatprep.subr.mxu0 0.0
        %664 = vmatpush1.xpose.msra.mxu0 0.0
        %665 = vmatprep.subr.mxu0 0.0
        %666 = vmatpush1.xpose.msra.mxu0 0.0
        %667 = vmatprep.subr.mxu0 0.0
        %668 = vmatpush1.xpose.msra.mxu0 0.0
        %669 = vmatprep.subr.mxu0 0.0
        %670 = vmatpush1.xpose.msra.mxu0 0.0
        %671 = vmatprep.subr.mxu0 0.0
        %672 = vmatpush1.xpose.msra.mxu0 0.0
        %673 = vmatprep.subr.mxu0 0.0
        %674 = vmatpush1.xpose.msra.mxu0 0.0
        %675 = vmatprep.subr.mxu0 0.0
        %676 = vmatpush1.xpose.msra.mxu0 0.0
        %677 = vmatprep.subr.mxu0 0.0
        %678 = vmatpush1.xpose.msra.mxu0 0.0
        %679 = vmatprep.subr.mxu0 0.0
        %680 = vmatpush1.xpose.msra.mxu0 0.0
        %681 = vmatprep.subr.mxu0 0.0
        %682 = vmatpush1.xpose.msra.mxu0 0.0
        %683 = vmatprep.subr.mxu0 0.0
        %684 = vmatpush1.xpose.msra.mxu0 0.0
        %685 = vmatprep.subr.mxu0 0.0
        %686 = vmatpush1.xpose.msra.mxu0 0.0
        %687 = vmatprep.subr.mxu0 0.0
        %688 = vmatpush1.xpose.msra.mxu0 0.0
        %689 = vmatprep.subr.mxu0 0.0
        %690 = vmatpush1.xpose.msra.mxu0 0.0
        %691 = vmatprep.subr.mxu0 0.0
        %692 = vmatpush1.xpose.msra.mxu0 0.0
        %693 = vmatprep.subr.mxu0 0.0
        %694 = vmatpush1.xpose.msra.mxu0 0.0
        %695 = vmatprep.subr.mxu0 0.0
        %696 = vmatpush1.xpose.msra.mxu0 0.0
        %697 = vmatprep.subr.mxu0 0.0
        %698 = vmatpush1.xpose.msra.mxu0 0.0
        %699 = vmatprep.subr.mxu0 0.0
        %700 = vmatpush1.xpose.msra.mxu0 0.0
        %701 = vmatprep.subr.mxu0 0.0
        %702 = vmatpush1.xpose.msra.mxu0 0.0
        %703 = vmatprep.subr.mxu0 0.0
        %704 = vmatpush1.xpose.msra.mxu0 0.0
        %705 = vmatprep.subr.mxu0 0.0
        %706 = vmatpush1.xpose.msra.mxu0 0.0
        %707 = vmatprep.subr.mxu0 0.0
        %708 = vmatpush1.xpose.msra.mxu0 0.0
        %709 = vmatprep.subr.mxu0 0.0
        %710 = vmatpush1.xpose.msra.mxu0 0.0
        %711 = vmatprep.subr.mxu0 0.0
        %712 = vmatpush1.xpose.msra.mxu0 0.0
        %713 = vmatprep.subr.mxu0 0.0
        %714 = vmatpush1.xpose.msra.mxu0 0.0
        %715 = vmatprep.subr.mxu0 0.0
        %716 = vmatpush1.xpose.msra.mxu0 0.0
        %717 = vmatprep.subr.mxu0 0.0
        %718 = vmatpush1.xpose.msra.mxu0 0.0
        %719 = vmatprep.subr.mxu0 0.0
        %720 = vmatpush1.xpose.msra.mxu0 0.0
        %721 = vmatprep.mubr.f32.mxu0 0.0
        %v722 = vand.u32 %v176, 4294901760
        %v723 = vsub.f32 %v176, %v722
        %v724 = vand.u32 %v723, 4294901760
        %v725 = vsub.f32 %v723, %v724
        %v726 = vand.u32 %v725, 4294901760
        %727 = vmatmul.mubr.f32.gmra.mrb[0].mxu0 %v726
        %v728 = vpop.f32.mrb[0].mxu0
        %v729 = vadd.f32 0.0, %v728
        %v730 = vpop.f32.mrb[0].mxu0
        %731 = vdwg.mxu0
        %732 = vmatprep.subr.mxu0 0.0
        %v733 = vand.u32 %v650, 4294901760
        %v734 = vsub.f32 %v650, %v733
        %v735 = vand.u32 %v734, 4294901760
        %v736 = vsub.f32 %v734, %v735
        %v737 = vand.u32 %v736, 4294901760
        %738 = vmatpush1.xpose.msra.mxu0 %v737
        %739 = vmatprep.subr.mxu0 0.0
        %v740 = vand.u32 %v653, 4294901760
        %v741 = vsub.f32 %v653, %v740
        %v742 = vand.u32 %v741, 4294901760
        %v743 = vsub.f32 %v741, %v742
        %v744 = vand.u32 %v743, 4294901760
        %745 = vmatpush1.xpose.msra.mxu0 %v744
        %746 = vmatprep.subr.mxu0 0.0
        %747 = vmatpush1.xpose.msra.mxu0 0.0
        %748 = vmatprep.subr.mxu0 0.0
        %749 = vmatpush1.xpose.msra.mxu0 0.0
        %750 = vmatprep.subr.mxu0 0.0
        %751 = vmatpush1.xpose.msra.mxu0 0.0
        %752 = vmatprep.subr.mxu0 0.0
        %753 = vmatpush1.xpose.msra.mxu0 0.0
        %754 = vmatprep.subr.mxu0 0.0
        %755 = vmatpush1.xpose.msra.mxu0 0.0
        %756 = vmatprep.subr.mxu0 0.0
        %757 = vmatpush1.xpose.msra.mxu0 0.0
        %758 = vmatprep.subr.mxu0 0.0
        %759 = vmatpush1.xpose.msra.mxu0 0.0
        %760 = vmatprep.subr.mxu0 0.0
        %761 = vmatpush1.xpose.msra.mxu0 0.0
        %762 = vmatprep.subr.mxu0 0.0
        %763 = vmatpush1.xpose.msra.mxu0 0.0
        %764 = vmatprep.subr.mxu0 0.0
        %765 = vmatpush1.xpose.msra.mxu0 0.0
        %766 = vmatprep.subr.mxu0 0.0
        %767 = vmatpush1.xpose.msra.mxu0 0.0
        %768 = vmatprep.subr.mxu0 0.0
        %769 = vmatpush1.xpose.msra.mxu0 0.0
        %770 = vmatprep.subr.mxu0 0.0
        %771 = vmatpush1.xpose.msra.mxu0 0.0
        %772 = vmatprep.subr.mxu0 0.0
        %773 = vmatpush1.xpose.msra.mxu0 0.0
        %774 = vmatprep.subr.mxu0 0.0
        %775 = vmatpush1.xpose.msra.mxu0 0.0
        %776 = vmatprep.subr.mxu0 0.0
        %777 = vmatpush1.xpose.msra.mxu0 0.0
        %778 = vmatprep.subr.mxu0 0.0
        %779 = vmatpush1.xpose.msra.mxu0 0.0
        %780 = vmatprep.subr.mxu0 0.0
        %781 = vmatpush1.xpose.msra.mxu0 0.0
        %782 = vmatprep.subr.mxu0 0.0
        %783 = vmatpush1.xpose.msra.mxu0 0.0
        %784 = vmatprep.subr.mxu0 0.0
        %785 = vmatpush1.xpose.msra.mxu0 0.0
        %786 = vmatprep.subr.mxu0 0.0
        %787 = vmatpush1.xpose.msra.mxu0 0.0
        %788 = vmatprep.subr.mxu0 0.0
        %789 = vmatpush1.xpose.msra.mxu0 0.0
        %790 = vmatprep.subr.mxu0 0.0
        %791 = vmatpush1.xpose.msra.mxu0 0.0
        %792 = vmatprep.subr.mxu0 0.0
        %793 = vmatpush1.xpose.msra.mxu0 0.0
        %794 = vmatprep.subr.mxu0 0.0
        %795 = vmatpush1.xpose.msra.mxu0 0.0
        %796 = vmatprep.subr.mxu0 0.0
        %797 = vmatpush1.xpose.msra.mxu0 0.0
        %798 = vmatprep.subr.mxu0 0.0
        %799 = vmatpush1.xpose.msra.mxu0 0.0
        %800 = vmatprep.subr.mxu0 0.0
        %801 = vmatpush1.xpose.msra.mxu0 0.0
        %802 = vmatprep.subr.mxu0 0.0
        %803 = vmatpush1.xpose.msra.mxu0 0.0
        %804 = vmatprep.subr.mxu0 0.0
        %805 = vmatpush1.xpose.msra.mxu0 0.0
        %806 = vmatprep.mubr.f32.mxu0 0.0
        %v807 = vand.u32 %v176, 4294901760
        %808 = vmatmul.mubr.f32.gmra.mrb[0].mxu0 %v807
        %v809 = vpop.f32.mrb[0].mxu0
        %v810 = vadd.f32 %v729, %v809
        %v811 = vpop.f32.mrb[0].mxu0
        %812 = vdwg.mxu0
        %813 = vmatprep.subr.mxu0 0.0
        %v814 = vand.u32 %v650, 4294901760
        %v815 = vsub.f32 %v650, %v814
        %816 = vmatpush1.xpose.msra.mxu0 %v815
        %817 = vmatprep.subr.mxu0 0.0
        %v818 = vand.u32 %v653, 4294901760
        %v819 = vsub.f32 %v653, %v818
        %820 = vmatpush1.xpose.msra.mxu0 %v819
        %821 = vmatprep.subr.mxu0 0.0
        %822 = vmatpush1.xpose.msra.mxu0 0.0
        %823 = vmatprep.subr.mxu0 0.0
        %824 = vmatpush1.xpose.msra.mxu0 0.0
        %825 = vmatprep.subr.mxu0 0.0
        %826 = vmatpush1.xpose.msra.mxu0 0.0
        %827 = vmatprep.subr.mxu0 0.0
        %828 = vmatpush1.xpose.msra.mxu0 0.0
        %829 = vmatprep.subr.mxu0 0.0
        %830 = vmatpush1.xpose.msra.mxu0 0.0
        %831 = vmatprep.subr.mxu0 0.0
        %832 = vmatpush1.xpose.msra.mxu0 0.0
        %833 = vmatprep.subr.mxu0 0.0
        %834 = vmatpush1.xpose.msra.mxu0 0.0
        %835 = vmatprep.subr.mxu0 0.0
        %836 = vmatpush1.xpose.msra.mxu0 0.0
        %837 = vmatprep.subr.mxu0 0.0
        %838 = vmatpush1.xpose.msra.mxu0 0.0
        %839 = vmatprep.subr.mxu0 0.0
        %840 = vmatpush1.xpose.msra.mxu0 0.0
        %841 = vmatprep.subr.mxu0 0.0
        %842 = vmatpush1.xpose.msra.mxu0 0.0
        %843 = vmatprep.subr.mxu0 0.0
        %844 = vmatpush1.xpose.msra.mxu0 0.0
        %845 = vmatprep.subr.mxu0 0.0
        %846 = vmatpush1.xpose.msra.mxu0 0.0
        %847 = vmatprep.subr.mxu0 0.0
        %848 = vmatpush1.xpose.msra.mxu0 0.0
        %849 = vmatprep.subr.mxu0 0.0
        %850 = vmatpush1.xpose.msra.mxu0 0.0
        %851 = vmatprep.subr.mxu0 0.0
        %852 = vmatpush1.xpose.msra.mxu0 0.0
        %853 = vmatprep.subr.mxu0 0.0
        %854 = vmatpush1.xpose.msra.mxu0 0.0
        %855 = vmatprep.subr.mxu0 0.0
        %856 = vmatpush1.xpose.msra.mxu0 0.0
        %857 = vmatprep.subr.mxu0 0.0
        %858 = vmatpush1.xpose.msra.mxu0 0.0
        %859 = vmatprep.subr.mxu0 0.0
        %860 = vmatpush1.xpose.msra.mxu0 0.0
        %861 = vmatprep.subr.mxu0 0.0
        %862 = vmatpush1.xpose.msra.mxu0 0.0
        %863 = vmatprep.subr.mxu0 0.0
        %864 = vmatpush1.xpose.msra.mxu0 0.0
        %865 = vmatprep.subr.mxu0 0.0
        %866 = vmatpush1.xpose.msra.mxu0 0.0
        %867 = vmatprep.subr.mxu0 0.0
        %868 = vmatpush1.xpose.msra.mxu0 0.0
        %869 = vmatprep.subr.mxu0 0.0
        %870 = vmatpush1.xpose.msra.mxu0 0.0
        %871 = vmatprep.subr.mxu0 0.0
        %872 = vmatpush1.xpose.msra.mxu0 0.0
        %873 = vmatprep.subr.mxu0 0.0
        %874 = vmatpush1.xpose.msra.mxu0 0.0
        %875 = vmatprep.subr.mxu0 0.0
        %876 = vmatpush1.xpose.msra.mxu0 0.0
        %877 = vmatprep.subr.mxu0 0.0
        %878 = vmatpush1.xpose.msra.mxu0 0.0
        %879 = vmatprep.subr.mxu0 0.0
        %880 = vmatpush1.xpose.msra.mxu0 0.0
        %881 = vmatprep.mubr.f32.mxu0 0.0
        %v882 = vand.u32 %v176, 4294901760
        %v883 = vsub.f32 %v176, %v882
        %884 = vmatmul.mubr.f32.gmra.mrb[0].mxu0 %v883
        %v885 = vpop.f32.mrb[0].mxu0
        %v886 = vadd.f32 %v810, %v885
        %v887 = vpop.f32.mrb[0].mxu0
        %888 = vdwg.mxu0
        %889 = vmatprep.subr.mxu0 0.0
        %v890 = vand.u32 %v650, 4294901760
        %891 = vmatpush1.xpose.msra.mxu0 %v890
        %892 = vmatprep.subr.mxu0 0.0
        %v893 = vand.u32 %v653, 4294901760
        %894 = vmatpush1.xpose.msra.mxu0 %v893
        %895 = vmatprep.subr.mxu0 0.0
        %896 = vmatpush1.xpose.msra.mxu0 0.0
        %897 = vmatprep.subr.mxu0 0.0
        %898 = vmatpush1.xpose.msra.mxu0 0.0
        %899 = vmatprep.subr.mxu0 0.0
        %900 = vmatpush1.xpose.msra.mxu0 0.0
        %901 = vmatprep.subr.mxu0 0.0
        %902 = vmatpush1.xpose.msra.mxu0 0.0
        %903 = vmatprep.subr.mxu0 0.0
        %904 = vmatpush1.xpose.msra.mxu0 0.0
        %905 = vmatprep.subr.mxu0 0.0
        %906 = vmatpush1.xpose.msra.mxu0 0.0
        %907 = vmatprep.subr.mxu0 0.0
        %908 = vmatpush1.xpose.msra.mxu0 0.0
        %909 = vmatprep.subr.mxu0 0.0
        %910 = vmatpush1.xpose.msra.mxu0 0.0
        %911 = vmatprep.subr.mxu0 0.0
        %912 = vmatpush1.xpose.msra.mxu0 0.0
        %913 = vmatprep.subr.mxu0 0.0
        %914 = vmatpush1.xpose.msra.mxu0 0.0
        %915 = vmatprep.subr.mxu0 0.0
        %916 = vmatpush1.xpose.msra.mxu0 0.0
        %917 = vmatprep.subr.mxu0 0.0
        %918 = vmatpush1.xpose.msra.mxu0 0.0
        %919 = vmatprep.subr.mxu0 0.0
        %920 = vmatpush1.xpose.msra.mxu0 0.0
        %921 = vmatprep.subr.mxu0 0.0
        %922 = vmatpush1.xpose.msra.mxu0 0.0
        %923 = vmatprep.subr.mxu0 0.0
        %924 = vmatpush1.xpose.msra.mxu0 0.0
        %925 = vmatprep.subr.mxu0 0.0
        %926 = vmatpush1.xpose.msra.mxu0 0.0
        %927 = vmatprep.subr.mxu0 0.0
        %928 = vmatpush1.xpose.msra.mxu0 0.0
        %929 = vmatprep.subr.mxu0 0.0
        %930 = vmatpush1.xpose.msra.mxu0 0.0
        %931 = vmatprep.subr.mxu0 0.0
        %932 = vmatpush1.xpose.msra.mxu0 0.0
        %933 = vmatprep.subr.mxu0 0.0
        %934 = vmatpush1.xpose.msra.mxu0 0.0
        %935 = vmatprep.subr.mxu0 0.0
        %936 = vmatpush1.xpose.msra.mxu0 0.0
        %937 = vmatprep.subr.mxu0 0.0
        %938 = vmatpush1.xpose.msra.mxu0 0.0
        %939 = vmatprep.subr.mxu0 0.0
        %940 = vmatpush1.xpose.msra.mxu0 0.0
        %941 = vmatprep.subr.mxu0 0.0
        %942 = vmatpush1.xpose.msra.mxu0 0.0
        %943 = vmatprep.subr.mxu0 0.0
        %944 = vmatpush1.xpose.msra.mxu0 0.0
        %945 = vmatprep.subr.mxu0 0.0
        %946 = vmatpush1.xpose.msra.mxu0 0.0
        %947 = vmatprep.subr.mxu0 0.0
        %948 = vmatpush1.xpose.msra.mxu0 0.0
        %949 = vmatprep.subr.mxu0 0.0
        %950 = vmatpush1.xpose.msra.mxu0 0.0
        %951 = vmatprep.subr.mxu0 0.0
        %952 = vmatpush1.xpose.msra.mxu0 0.0
        %953 = vmatprep.subr.mxu0 0.0
        %954 = vmatpush1.xpose.msra.mxu0 0.0
        %955 = vmatprep.mubr.f32.mxu0 0.0
        %v956 = vand.u32 %v176, 4294901760
        %v957 = vsub.f32 %v176, %v956
        %v958 = vand.u32 %v957, 4294901760
        %959 = vmatmul.mubr.f32.gmra.mrb[0].mxu0 %v958
        %v960 = vpop.f32.mrb[0].mxu0
        %v961 = vadd.f32 %v886, %v960
        %v962 = vpop.f32.mrb[0].mxu0
        %963 = vdwg.mxu0
        %964 = vmatprep.subr.mxu0 0.0
        %v965 = vand.u32 %v650, 4294901760
        %v966 = vsub.f32 %v650, %v965
        %v967 = vand.u32 %v966, 4294901760
        %968 = vmatpush1.xpose.msra.mxu0 %v967
        %969 = vmatprep.subr.mxu0 0.0
        %v970 = vand.u32 %v653, 4294901760
        %v971 = vsub.f32 %v653, %v970
        %v972 = vand.u32 %v971, 4294901760
        %973 = vmatpush1.xpose.msra.mxu0 %v972
        %974 = vmatprep.subr.mxu0 0.0
        %975 = vmatpush1.xpose.msra.mxu0 0.0
        %976 = vmatprep.subr.mxu0 0.0
        %977 = vmatpush1.xpose.msra.mxu0 0.0
        %978 = vmatprep.subr.mxu0 0.0
        %979 = vmatpush1.xpose.msra.mxu0 0.0
        %980 = vmatprep.subr.mxu0 0.0
        %981 = vmatpush1.xpose.msra.mxu0 0.0
        %982 = vmatprep.subr.mxu0 0.0
        %983 = vmatpush1.xpose.msra.mxu0 0.0
        %984 = vmatprep.subr.mxu0 0.0
        %985 = vmatpush1.xpose.msra.mxu0 0.0
        %986 = vmatprep.subr.mxu0 0.0
        %987 = vmatpush1.xpose.msra.mxu0 0.0
        %988 = vmatprep.subr.mxu0 0.0
        %989 = vmatpush1.xpose.msra.mxu0 0.0
        %990 = vmatprep.subr.mxu0 0.0
        %991 = vmatpush1.xpose.msra.mxu0 0.0
        %992 = vmatprep.subr.mxu0 0.0
        %993 = vmatpush1.xpose.msra.mxu0 0.0
        %994 = vmatprep.subr.mxu0 0.0
        %995 = vmatpush1.xpose.msra.mxu0 0.0
        %996 = vmatprep.subr.mxu0 0.0
        %997 = vmatpush1.xpose.msra.mxu0 0.0
        %998 = vmatprep.subr.mxu0 0.0
        %999 = vmatpush1.xpose.msra.mxu0 0.0
        %1000 = vmatprep.subr.mxu0 0.0
        %1001 = vmatpush1.xpose.msra.mxu0 0.0
        %1002 = vmatprep.subr.mxu0 0.0
        %1003 = vmatpush1.xpose.msra.mxu0 0.0
        %1004 = vmatprep.subr.mxu0 0.0
        %1005 = vmatpush1.xpose.msra.mxu0 0.0
        %1006 = vmatprep.subr.mxu0 0.0
        %1007 = vmatpush1.xpose.msra.mxu0 0.0
        %1008 = vmatprep.subr.mxu0 0.0
        %1009 = vmatpush1.xpose.msra.mxu0 0.0
        %1010 = vmatprep.subr.mxu0 0.0
        %1011 = vmatpush1.xpose.msra.mxu0 0.0
        %1012 = vmatprep.subr.mxu0 0.0
        %1013 = vmatpush1.xpose.msra.mxu0 0.0
        %1014 = vmatprep.subr.mxu0 0.0
        %1015 = vmatpush1.xpose.msra.mxu0 0.0
        %1016 = vmatprep.subr.mxu0 0.0
        %1017 = vmatpush1.xpose.msra.mxu0 0.0
        %1018 = vmatprep.subr.mxu0 0.0
        %1019 = vmatpush1.xpose.msra.mxu0 0.0
        %1020 = vmatprep.subr.mxu0 0.0
        %1021 = vmatpush1.xpose.msra.mxu0 0.0
        %1022 = vmatprep.subr.mxu0 0.0
        %1023 = vmatpush1.xpose.msra.mxu0 0.0
        %1024 = vmatprep.subr.mxu0 0.0
        %1025 = vmatpush1.xpose.msra.mxu0 0.0
        %1026 = vmatprep.subr.mxu0 0.0
        %1027 = vmatpush1.xpose.msra.mxu0 0.0
        %1028 = vmatprep.subr.mxu0 0.0
        %1029 = vmatpush1.xpose.msra.mxu0 0.0
        %1030 = vmatprep.subr.mxu0 0.0
        %1031 = vmatpush1.xpose.msra.mxu0 0.0
        %1032 = vmatprep.subr.mxu0 0.0
        %1033 = vmatpush1.xpose.msra.mxu0 0.0
        %1034 = vmatprep.mubr.f32.mxu0 0.0
        %v1035 = vand.u32 %v176, 4294901760
        %1036 = vmatmul.mubr.f32.gmra.mrb[0].mxu0 %v1035
        %v1037 = vpop.f32.mrb[0].mxu0
        %v1038 = vadd.f32 %v961, %v1037
        %v1039 = vpop.f32.mrb[0].mxu0
        %1040 = vdwg.mxu0
        %1041 = vmatprep.subr.mxu0 0.0
        %v1042 = vand.u32 %v650, 4294901760
        %1043 = vmatpush1.xpose.msra.mxu0 %v1042
        %1044 = vmatprep.subr.mxu0 0.0
        %v1045 = vand.u32 %v653, 4294901760
        %1046 = vmatpush1.xpose.msra.mxu0 %v1045
        %1047 = vmatprep.subr.mxu0 0.0
        %1048 = vmatpush1.xpose.msra.mxu0 0.0
        %1049 = vmatprep.subr.mxu0 0.0
        %1050 = vmatpush1.xpose.msra.mxu0 0.0
        %1051 = vmatprep.subr.mxu0 0.0
        %1052 = vmatpush1.xpose.msra.mxu0 0.0
        %1053 = vmatprep.subr.mxu0 0.0
        %1054 = vmatpush1.xpose.msra.mxu0 0.0
        %1055 = vmatprep.subr.mxu0 0.0
        %1056 = vmatpush1.xpose.msra.mxu0 0.0
        %1057 = vmatprep.subr.mxu0 0.0
        %1058 = vmatpush1.xpose.msra.mxu0 0.0
        %1059 = vmatprep.subr.mxu0 0.0
        %1060 = vmatpush1.xpose.msra.mxu0 0.0
        %1061 = vmatprep.subr.mxu0 0.0
        %1062 = vmatpush1.xpose.msra.mxu0 0.0
        %1063 = vmatprep.subr.mxu0 0.0
        %1064 = vmatpush1.xpose.msra.mxu0 0.0
        %1065 = vmatprep.subr.mxu0 0.0
        %1066 = vmatpush1.xpose.msra.mxu0 0.0
        %1067 = vmatprep.subr.mxu0 0.0
        %1068 = vmatpush1.xpose.msra.mxu0 0.0
        %1069 = vmatprep.subr.mxu0 0.0
        %1070 = vmatpush1.xpose.msra.mxu0 0.0
        %1071 = vmatprep.subr.mxu0 0.0
        %1072 = vmatpush1.xpose.msra.mxu0 0.0
        %1073 = vmatprep.subr.mxu0 0.0
        %1074 = vmatpush1.xpose.msra.mxu0 0.0
        %1075 = vmatprep.subr.mxu0 0.0
        %1076 = vmatpush1.xpose.msra.mxu0 0.0
        %1077 = vmatprep.subr.mxu0 0.0
        %1078 = vmatpush1.xpose.msra.mxu0 0.0
        %1079 = vmatprep.subr.mxu0 0.0
        %1080 = vmatpush1.xpose.msra.mxu0 0.0
        %1081 = vmatprep.subr.mxu0 0.0
        %1082 = vmatpush1.xpose.msra.mxu0 0.0
        %1083 = vmatprep.subr.mxu0 0.0
        %1084 = vmatpush1.xpose.msra.mxu0 0.0
        %1085 = vmatprep.subr.mxu0 0.0
        %1086 = vmatpush1.xpose.msra.mxu0 0.0
        %1087 = vmatprep.subr.mxu0 0.0
        %1088 = vmatpush1.xpose.msra.mxu0 0.0
        %1089 = vmatprep.subr.mxu0 0.0
        %1090 = vmatpush1.xpose.msra.mxu0 0.0
        %1091 = vmatprep.subr.mxu0 0.0
        %1092 = vmatpush1.xpose.msra.mxu0 0.0
        %1093 = vmatprep.subr.mxu0 0.0
        %1094 = vmatpush1.xpose.msra.mxu0 0.0
        %1095 = vmatprep.subr.mxu0 0.0
        %1096 = vmatpush1.xpose.msra.mxu0 0.0
        %1097 = vmatprep.subr.mxu0 0.0
        %1098 = vmatpush1.xpose.msra.mxu0 0.0
        %1099 = vmatprep.subr.mxu0 0.0
        %1100 = vmatpush1.xpose.msra.mxu0 0.0
        %1101 = vmatprep.subr.mxu0 0.0
        %1102 = vmatpush1.xpose.msra.mxu0 0.0
        %1103 = vmatprep.subr.mxu0 0.0
        %1104 = vmatpush1.xpose.msra.mxu0 0.0
        %1105 = vmatprep.subr.mxu0 0.0
        %1106 = vmatpush1.xpose.msra.mxu0 0.0
        %1107 = vmatprep.mubr.f32.mxu0 0.0
        %v1108 = vand.u32 %v176, 4294901760
        %1109 = vmatmul.mubr.f32.gmra.mrb[0].mxu0 %v1108
        %v1110 = vpop.f32.mrb[0].mxu0
        %v1111 = vadd.f32 %v1038, %v1110
        %v1112 = vpop.f32.mrb[0].mxu0
        %1113 = vdwg.mxu0
        %v1114 = vadd.f32 %v646, %v1111
        %1115 = vst.msk [vmem:[#allocation3] sm:$0x1] %vm644, %v1114
        // Predicated region
        $region33: #{tpu_custom_call.1} parent=23 // pred_check
          %p1116 = pneg %p164
        $region34: #{tpu_custom_call.1} parent=23 // pred_check_branch
          %1118 = sbr.rel (%p1116) target = $region36
        $region35: #{tpu_custom_call.1} parent=23 // pred_region
          %v1119 = vld [vmem:[#allocation2] sm:$0x1]
          %v1120 = vmul.f32 %v1119, 0.0625
          %v1121 = vld [vmem:[#allocation3] sm:$0x1]
          %v1122 = vmul.f32 %v1119, %v1120
          %v1123 = vsub.f32 %v1121, %v1122
          %v1124 = vmul.f32 %v1123, 0.06666667
          %v1125 = vmax.f32 %v1124, 0.0
          %v1126 = vrsqrt.pop %v1125
          %v1127 = vmul.f32 %v1125, %v1126
          %vm1128 = vcmp.eq.f32.partialorder %v1125, inf
          %v1129 = vsel %vm1128, %v1125, %v1127
          %vm1130 = vcmp.eq.f32.partialorder %v1125, 0.0
          %v1131 = vand.u32 %v1125, 2147483648
          %v1132 = vsel %vm1130, %v1131, %v1129
          %1133 = vst.msk [vmem:[%s162] sm:$0x1] %vm644, %v1120
          %1134 = vst.msk [vmem:[%s162 + $0x1] sm:$0x1] %vm644, %v1132
        $region36: #{tpu_custom_call.1} parent=23 // pred_fallthru
          _
        %s1135 = sand.u32 %s77, 1
        %s1136 = scalar_lea.sflag [#allocation6], %s1135
        %s1137 = sand.u32 %s77, 1
        %s1138 = smul.addr %s1137, 2
        %s1139 = scalar_lea.vmem [#allocation7], %s1138
        // Predicated region
        $region37: #{tpu_custom_call.1} parent=23 // pred_check
          %p1140 = pneg %p87
        $region38: #{tpu_custom_call.1} parent=23 // pred_check_branch
          %1142 = sbr.rel (%p1140) target = $region40
        $region39: #{tpu_custom_call.1} parent=23 // pred_region
          %s1144 = ssub.s32 32, 32
          %1145 = vsyncadd %s1136, %s1144
          %s1146 = sadd.s32 %s24, %s23
          %s1147 = smul.addr %s1146, 32
          %s1148 = scalar_lea.hbm %s1, %s1147
          %s1150 = sshll.u32 %s1139, 4
          %s1151 = int_to_ptr.vmem [resolvable:$true] %s1150
          %1153 = dma.vmem_to_hbm [thread:$0]  %s1151, 32, %s1148, %s1136
        $region40: #{tpu_custom_call.1} parent=23 // pred_fallthru
          _
      $region24: #{tpu_custom_call.1} parent=5 // pred_fallthru
        _
      %p1154 = scmp.le.s32.totalorder 2, %s13
      // Predicated region
      $region41: #{tpu_custom_call.1} parent=5 // pred_check
        %p1155 = pneg %p1154
      $region42: #{tpu_custom_call.1} parent=5 // pred_check_branch
        %1157 = sbr.rel (%p1155) target = $region44
      $region43: #{tpu_custom_call.1} parent=5 // pred_region
        %s1158 = ssub.s32 %s13, 2
        // Predicated region
        $region45: #{tpu_custom_call.1} parent=43 // pred_check
          %p1159 = pneg %p93
        $region46: #{tpu_custom_call.1} parent=43 // pred_check_branch
          %1161 = sbr.rel (%p1159) target = $region48
        $region47: #{tpu_custom_call.1} parent=43 // pred_region
          %s1162 = sand.u32 %s78, 1
          %s1163 = scalar_lea.sflag [#allocation6], %s1162
          %s1164 = sand.u32 %s78, 1
          %s1165 = smul.addr %s1164, 2
          %s1166 = scalar_lea.vmem [#allocation7], %s1165
          %1167 = dma.done %s1163, 32
        $region48: #{tpu_custom_call.1} parent=43 // pred_fallthru
          _
      $region44: #{tpu_custom_call.1} parent=5 // pred_fallthru
        _
    $region6: #{tpu_custom_call.1} parent=1 // loop_footer
      %s17 = sadd.s32 1, %s13
    $region7: #{tpu_custom_call.1} parent=1 // loop_footer_branch
      %12 = sbr.rel target = $region3
    $region8: #{tpu_custom_call.1} parent=1 // loop_exit
      _
    %1168 = vsyncpa [#allocation5], 1
    %s1169 = scalar_lea.sflag [#allocation5], 1
    %1170 = vsyncpa %s1169, 1
    %1171 = vsyncpa [#allocation6], 1
    %s1172 = scalar_lea.sflag [#allocation6], 1
    %1173 = vsyncpa %s1172, 1

</llo_original>
